<compile_context>
chip_gen: v7x
topology: tpu7x:2x2x1
jax: 0.10.0
libtpu: 0.0.40
codegen_flags: <defaults>
</compile_context>

<pallas_src>
import functools

import jax
import jax.numpy as jnp
from jax import lax
from jax.experimental import pallas as pl
from jax.experimental.pallas import tpu as pltpu


def _fc_relu_fc_sigmoid_rows(pooled, w1, w2, nb):
    """pooled: (2*nb, C) f32, rows 0..nb-1 = avg, rows nb..2nb-1 = max.

    Returns sigmoid(fc2(relu(fc1(avg))) + fc2(relu(fc1(max)))) as (nb, C) f32,
    using exactly two matmuls (batched over both pooling branches and images).
    """
    h = lax.dot_general(pooled, w1, (((1,), (1,)), ((), ())),
                        preferred_element_type=jnp.float32)        # (2nb, Cr)
    h = jnp.maximum(h, 0.0)
    y = lax.dot_general(h, w2, (((1,), (1,)), ((), ())),
                        preferred_element_type=jnp.float32)        # (2nb, C)
    return jax.nn.sigmoid(y[:nb] + y[nb:])                         # (nb, C)


def _ca_single_tile_kernel(x_ref, w1_ref, w2_ref, o_ref, *, nb, hw_total):
    # Fast path: the whole spatial extent of nb images is in this block.
    # x_ref: (nb, C, HW)   w1_ref: (Cr, C)   w2_ref: (C, Cr)   o_ref: (nb, C, 1)
    x = x_ref[...].astype(jnp.float32)
    s = jnp.sum(x, axis=2)                                         # (nb, C)
    m = jnp.max(x, axis=2)                                         # (nb, C)
    pooled = jnp.concatenate([s * (1.0 / float(hw_total)), m], axis=0)
    w1 = w1_ref[...].astype(jnp.float32)
    w2 = w2_ref[...].astype(jnp.float32)
    out = _fc_relu_fc_sigmoid_rows(pooled, w1, w2, nb)             # (nb, C)
    o_ref[...] = out[:, :, None].astype(o_ref.dtype)


def _ca_tiled_kernel(x_ref, w1_ref, w2_ref, o_ref, sum_acc, max_acc,
                     *, hw_total, tile_hw):
    # Tiled path (one image per batch step): HW reduced across an "arbitrary"
    # inner grid axis into f32 running sum/max accumulators.
    # x_ref: (1, C, tile_hw)   o_ref: (1, C, 1)   sum_acc/max_acc: (C, 1) f32
    j = pl.program_id(1)
    num_hw = pl.num_programs(1)

    @pl.when(j == 0)
    def _init():
        sum_acc[...] = jnp.zeros_like(sum_acc)
        max_acc[...] = jnp.full_like(max_acc, -jnp.inf)

    x = x_ref[0].astype(jnp.float32)                               # (C, tile_hw)

    rem = hw_total % tile_hw  # static
    if rem == 0:
        # Every tile is full: pure reduce on every step.
        sum_acc[...] += jnp.sum(x, axis=1, keepdims=True)
        max_acc[...] = jnp.maximum(max_acc[...],
                                   jnp.max(x, axis=1, keepdims=True))
    else:
        # Only the last HW tile is partial; keep the mask off the hot steps.
        @pl.when(j < num_hw - 1)
        def _acc_full():
            sum_acc[...] += jnp.sum(x, axis=1, keepdims=True)
            max_acc[...] = jnp.maximum(max_acc[...],
                                       jnp.max(x, axis=1, keepdims=True))

        @pl.when(j == num_hw - 1)
        def _acc_masked():
            lane = lax.broadcasted_iota(jnp.int32, x.shape, 1)
            valid = lane < rem
            sum_acc[...] += jnp.sum(jnp.where(valid, x, 0.0), axis=1,
                                    keepdims=True)
            max_acc[...] = jnp.maximum(
                max_acc[...],
                jnp.max(jnp.where(valid, x, -jnp.inf), axis=1, keepdims=True))

    @pl.when(j == num_hw - 1)
    def _finalize():
        w1 = w1_ref[...].astype(jnp.float32)                       # (Cr, C)
        w2 = w2_ref[...].astype(jnp.float32)                       # (C, Cr)
        avg = sum_acc[...] * (1.0 / float(hw_total))               # (C, 1)
        mx = max_acc[...]                                          # (C, 1)
        pooled = jnp.concatenate([avg, mx], axis=1)                # (C, 2)
        h = jnp.maximum(
            jnp.dot(w1, pooled, preferred_element_type=jnp.float32), 0.0)
        y = jnp.dot(w2, h, preferred_element_type=jnp.float32)     # (C, 2)
        o_ref[0] = jax.nn.sigmoid(y[:, 0:1] + y[:, 1:2]).astype(o_ref.dtype)


def channel_attention(x_nchw, w1, w2, *,
                      target_block_bytes=4 * 1024 * 1024,
                      max_batch_per_step=16):
    """x_nchw: (N, C, H, W); w1: (Cr, C, 1, 1); w2: (C, Cr, 1, 1) -> (N, C, 1, 1)."""
    N, C, H, W = x_nchw.shape
    Cr = w1.shape[0]
    HW = H * W
    itemsize = jnp.dtype(x_nchw.dtype).itemsize
    per_image_bytes = C * HW * itemsize

    if per_image_bytes <= target_block_bytes:
        tile_hw = HW
    else:
        tile_hw = max(128, (target_block_bytes // (C * itemsize)) // 128 * 128)
        if tile_hw >= HW:
            tile_hw = HW

    # Free reshapes only — no HBM transpose of x, weights just squeezed.
    x3 = x_nchw.reshape(N, C, HW)
    w1m = w1.reshape(Cr, C)
    w2m = w2.reshape(C, Cr)

    if tile_hw == HW:
        # ---------------- fast path: whole HW per step, several images -------
        cap = max(1, target_block_bytes // max(per_image_bytes, 1))
        nb = int(min(max_batch_per_step, cap, N))
        num_b = pl.cdiv(N, nb)   # no divisibility requirement; tail is masked
        block_bytes = nb * C * HW * itemsize
        vmem_limit = int(min(56 * 1024 * 1024, 3 * block_bytes + 8 * 1024 * 1024))

        kernel = functools.partial(_ca_single_tile_kernel, nb=nb, hw_total=HW)
        out = pl.pallas_call(
            kernel,
            out_shape=jax.ShapeDtypeStruct((N, C, 1), x_nchw.dtype),
            grid=(num_b,),
            in_specs=[
                pl.BlockSpec((nb, C, HW), lambda i: (i, 0, 0)),
                pl.BlockSpec((Cr, C), lambda i: (0, 0)),
                pl.BlockSpec((C, Cr), lambda i: (0, 0)),
            ],
            out_specs=pl.BlockSpec((nb, C, 1), lambda i: (i, 0, 0)),
            compiler_params=pltpu.CompilerParams(
                dimension_semantics=("parallel",),
                vmem_limit_bytes=vmem_limit),
        )(x3, w1m, w2m)
    else:
        # ---------------- tiled path: one image per step, HW tiled -----------
        num_hw = pl.cdiv(HW, tile_hw)
        block_bytes = C * tile_hw * itemsize
        vmem_limit = int(min(56 * 1024 * 1024, 3 * block_bytes + 8 * 1024 * 1024))

        kernel = functools.partial(_ca_tiled_kernel, hw_total=HW,
                                   tile_hw=tile_hw)
        out = pl.pallas_call(
            kernel,
            out_shape=jax.ShapeDtypeStruct((N, C, 1), x_nchw.dtype),
            grid=(N, num_hw),
            in_specs=[
                pl.BlockSpec((1, C, tile_hw), lambda i, j: (i, 0, j)),
                pl.BlockSpec((Cr, C), lambda i, j: (0, 0)),
                pl.BlockSpec((C, Cr), lambda i, j: (0, 0)),
            ],
            out_specs=pl.BlockSpec((1, C, 1), lambda i, j: (i, 0, 0)),
            scratch_shapes=[
                pltpu.VMEM((C, 1), jnp.float32),   # running spatial sum
                pltpu.VMEM((C, 1), jnp.float32),   # running spatial max
            ],
            compiler_params=pltpu.CompilerParams(
                dimension_semantics=("parallel", "arbitrary"),
                vmem_limit_bytes=vmem_limit),
        )(x3, w1m, w2m)

    # (N, C, 1) -> (N, C, 1, 1): contiguous reshape, no data movement.
    return out.reshape(N, C, 1, 1)


def channel_attention_ref(x, w1, w2):
    """Plain-JAX reference mirroring the PyTorch forward."""
    N, C, H, W = x.shape
    Cr = w1.shape[0]
    w1m = w1.reshape(Cr, C)
    w2m = w2.reshape(C, Cr)
    avg = jnp.mean(x, axis=(2, 3))                       # (N, C)
    mx = jnp.max(x, axis=(2, 3))                         # (N, C)
    f = lambda p: (jnp.maximum(p @ w1m.T, 0.0)) @ w2m.T  # (N, C)
    out = jax.nn.sigmoid(f(avg) + f(mx))
    return out.reshape(N, C, 1, 1)


if __name__ == "__main__":
    key = jax.random.PRNGKey(0)
    k_x, k_w1, k_w2, k_x2, k_x3 = jax.random.split(key, 5)

    # in_planes must be >= 16 so that in_planes // 16 >= 1.
    N, C, H, W = 2, 64, 16, 16
    Cr = C // 16

    x = jax.random.normal(k_x, (N, C, H, W), dtype=jnp.float32)
    w1 = jax.random.normal(k_w1, (Cr, C, 1, 1), dtype=jnp.float32) * (1.0 / jnp.sqrt(C))
    w2 = jax.random.normal(k_w2, (C, Cr, 1, 1), dtype=jnp.float32) * (1.0 / jnp.sqrt(Cr))

    # Path 1: fast path (single HW tile, batched images per grid step).
    out = jax.block_until_ready(channel_attention(x, w1, w2))
    ref = channel_attention_ref(x, w1, w2)
    assert out.shape == (N, C, 1, 1)
    assert jnp.allclose(out, ref, atol=1e-5, rtol=1e-5)

    # Path 2: force HW tiling with a partial (masked) last tile.
    x2 = jax.random.normal(k_x2, (N, C, 20, 20), dtype=jnp.float32)
    out2 = jax.block_until_ready(
        channel_attention(x2, w1, w2, target_block_bytes=32 * 1024))
    ref2 = channel_attention_ref(x2, w1, w2)
    assert out2.shape == (N, C, 1, 1)
    assert jnp.allclose(out2, ref2, atol=1e-5, rtol=1e-5)

    # Path 3: fast path with a partial batch-tail group (N % nb != 0).
    x3 = jax.random.normal(k_x3, (3, C, H, W), dtype=jnp.float32)
    out3 = jax.block_until_ready(
        channel_attention(x3, w1, w2, max_batch_per_step=2))
    ref3 = channel_attention_ref(x3, w1, w2)
    assert out3.shape == (3, C, 1, 1)
    assert jnp.allclose(out3, ref3, atol=1e-5, rtol=1e-5)

    print("KERNEL_OK")
</pallas_src>

<mosaic_0001>
module attributes {stable_mosaic.version = 11 : i64} {
  func.func @_ca_single_tile_kernel(%arg0: i32, %arg1: memref<2x64x256xf32, #tpu.memory_space<vmem>>, %arg2: memref<4x64xf32, #tpu.memory_space<vmem>>, %arg3: memref<64x4xf32, #tpu.memory_space<vmem>>, %arg4: memref<2x64x1xf32, #tpu.memory_space<vmem>>) attributes {dimension_semantics = [#tpu.dimension_semantics<parallel>], iteration_bounds = array<i64: 1>, scalar_prefetch = 0 : i64, scratch_operands = 0 : i64, tpu.core_type = #tpu.core_type<tc>, window_params = [{transform_indices = @transform_0, window_bounds = array<i64: 2, 64, 256>}, {pipeline_mode = #tpu.pipeline_mode<synchronous>, transform_indices = @transform_1, window_bounds = array<i64: 4, 64>}, {pipeline_mode = #tpu.pipeline_mode<synchronous>, transform_indices = @transform_2, window_bounds = array<i64: 64, 4>}, {transform_indices = @transform_3, window_bounds = array<i64: 2, 64, 1>}]} {
    %c0 = arith.constant 0 : index
    %c0_0 = arith.constant 0 : index
    %c0_1 = arith.constant 0 : index
    %0 = vector.load %arg1[%c0, %c0_0, %c0_1] : memref<2x64x256xf32, #tpu.memory_space<vmem>>, vector<2x64x256xf32>
    %cst = arith.constant dense<0.000000e+00> : vector<2x64xf32>
    %1 = vector.multi_reduction <add>, %0, %cst [2] : vector<2x64x256xf32> to vector<2x64xf32>
    %cst_2 = arith.constant dense<0xFF800000> : vector<2x64xf32>
    %2 = vector.multi_reduction <maximumf>, %0, %cst_2 [2] : vector<2x64x256xf32> to vector<2x64xf32>
    %cst_3 = arith.constant 3.906250e-03 : f32
    %3 = vector.broadcast %cst_3 : f32 to vector<2x64xf32>
    %4 = arith.mulf %1, %3 : vector<2x64xf32>
    %5 = tpu.concatenate %4, %2 in 0 : vector<2x64xf32>, vector<2x64xf32> -> vector<4x64xf32>
    %c0_4 = arith.constant 0 : index
    %c0_5 = arith.constant 0 : index
    %6 = vector.load %arg2[%c0_4, %c0_5] : memref<4x64xf32, #tpu.memory_space<vmem>>, vector<4x64xf32>
    %c0_6 = arith.constant 0 : index
    %c0_7 = arith.constant 0 : index
    %7 = vector.load %arg3[%c0_6, %c0_7] : memref<64x4xf32, #tpu.memory_space<vmem>>, vector<64x4xf32>
    %cst_8 = arith.constant dense<0.000000e+00> : vector<4x4xf32>
    %8 = tpu.matmul %5, %6, %cst_8 {dimension_numbers = #tpu.dot_dimension_numbers<[1], [1], [0], [0], [0, 0, 1, 0], [], []>} : vector<4x64xf32>, vector<4x64xf32>, vector<4x4xf32> -> vector<4x4xf32>
    %cst_9 = arith.constant 0.000000e+00 : f32
    %9 = vector.broadcast %cst_9 : f32 to vector<4x4xf32>
    %10 = arith.maximumf %8, %9 : vector<4x4xf32>
    %cst_10 = arith.constant dense<0.000000e+00> : vector<4x64xf32>
    %11 = tpu.matmul %10, %7, %cst_10 {dimension_numbers = #tpu.dot_dimension_numbers<[1], [1], [0], [0], [0, 0, 1, 0], [], []>} : vector<4x4xf32>, vector<64x4xf32>, vector<4x64xf32> -> vector<4x64xf32>
    %12 = vector.extract_strided_slice %11 {offsets = [0, 0], sizes = [2, 64], strides = [1, 1]} : vector<4x64xf32> to vector<2x64xf32>
    %13 = vector.extract_strided_slice %11 {offsets = [2, 0], sizes = [2, 64], strides = [1, 1]} : vector<4x64xf32> to vector<2x64xf32>
    %14 = arith.addf %12, %13 : vector<2x64xf32>
    %15 = arith.negf %14 : vector<2x64xf32>
    %16 = math.exp %15 : vector<2x64xf32>
    %cst_11 = arith.constant 1.000000e+00 : f32
    %17 = vector.broadcast %cst_11 : f32 to vector<2x64xf32>
    %18 = arith.addf %17, %16 : vector<2x64xf32>
    %19 = arith.divf %17, %18 : vector<2x64xf32>
    %20 = vector.shape_cast %19 : vector<2x64xf32> to vector<2x64x1xf32>
    %c0_12 = arith.constant 0 : index
    %c0_13 = arith.constant 0 : index
    %c0_14 = arith.constant 0 : index
    %21 = vector.load %arg4[%c0_12, %c0_13, %c0_14] : memref<2x64x1xf32, #tpu.memory_space<vmem>>, vector<2x64x1xf32>
    tpu.vector_store %arg4[%c0_12, %c0_13, %c0_14], %20 {strides = array<i32>} : memref<2x64x1xf32, #tpu.memory_space<vmem>>, vector<2x64x1xf32>,
    return
  }
  func.func @transform_0(%arg0: i32) -> (i32, i32, i32) {
    %c0_i32 = arith.constant 0 : i32
    %c0_i32_0 = arith.constant 0 : i32
    %c0_i32_1 = arith.constant 0 : i32
    return %arg0, %c0_i32, %c0_i32_0 : i32, i32, i32
  }
  func.func @transform_1(%arg0: i32) -> (i32, i32) {
    %c0_i32 = arith.constant 0 : i32
    %c0_i32_0 = arith.constant 0 : i32
    %c0_i32_1 = arith.constant 0 : i32
    return %c0_i32, %c0_i32_0 : i32, i32
  }
  func.func @transform_2(%arg0: i32) -> (i32, i32) {
    %c0_i32 = arith.constant 0 : i32
    %c0_i32_0 = arith.constant 0 : i32
    %c0_i32_1 = arith.constant 0 : i32
    return %c0_i32, %c0_i32_0 : i32, i32
  }
  func.func @transform_3(%arg0: i32) -> (i32, i32, i32) {
    %c0_i32 = arith.constant 0 : i32
    %c0_i32_0 = arith.constant 0 : i32
    %c0_i32_1 = arith.constant 0 : i32
    return %arg0, %c0_i32, %c0_i32_0 : i32, i32, i32
  }
}

</mosaic_0001>

<llo_original>
// kernel: tpu_custom_call.1
$region0: #{tpu_custom_call.1}
  #allocation0 [shape = 'u32[]', space=smem, size = 0x4, offset = 0x4, fixed_abs, tag = 'smem constant byte address 0x4 - core index']
  #allocation1 [shape = 'u32[144,128]{1,0:T(1,128)}', space=vmem, size = 0x12000, scoped, tag = 'internal scratch']
  %s0 = inlined_call_operand.hbm [shape: f32[2,64,256], index: 0, kind: input, shape index: {}]
  %s1 = inlined_call_operand.vmem [shape: f32[4,64], index: 1, kind: input, shape index: {}]
  %s2 = inlined_call_operand.vmem [shape: f32[64,4], index: 2, kind: input, shape index: {}]
  %s3 = inlined_call_operand.vmem [shape: f32[2,64,1], index: 3, kind: output, shape index: {}]
  %s4 = sld [smem:[#allocation0]]
  $region26: #{tpu_custom_call.1} parent=0
    _
  %s6 = ssub.s32 1, %s4
  %s7 = scalar_select 0, %s6, %s4
  $region1: #{tpu_custom_call.1} parent=0
    #allocation2 [shape = 'u8[131072]{0}', space=vmem, size = 0x20000, scoped, tag = 'input window, operand 0, single buffered']
    #allocation3 [shape = 's32[1]{0}', space=sflag, size = 0x4, scoped, tag = 'scoped memory for tpu_custom_call.1']
    %8 = vsyncpa [#allocation3], 0
    // Predicated region
    $region2: #{tpu_custom_call.1} parent=1 // pred_check
      _
    $region3: #{tpu_custom_call.1} parent=1 // pred_check_branch
      %10 = sbr.rel (0) target = $region5
    $region4: #{tpu_custom_call.1} parent=1 // pred_region
      %s12 = ssub.s32 4096, 4096
      %13 = vsyncadd [#allocation3], %s12
      %s14 = sshll.u32 [#allocation2], 4
      %s15 = int_to_ptr.vmem [resolvable:$true] %s14
      %20 = dma.hbm_to_vmem [thread:$0]  %s0, 4096, %s15, [#allocation3], 256, 256, 16
    $region5: #{tpu_custom_call.1} parent=1 // pred_fallthru
      _
    // Predicated region
    $region6: #{tpu_custom_call.1} parent=1 // pred_check
      _
    $region7: #{tpu_custom_call.1} parent=1 // pred_check_branch
      %22 = sbr.rel (0) target = $region9
    $region8: #{tpu_custom_call.1} parent=1 // pred_region
      _
    $region9: #{tpu_custom_call.1} parent=1 // pred_fallthru
      _
    // Predicated region
    $region10: #{tpu_custom_call.1} parent=1 // pred_check
      _
    $region11: #{tpu_custom_call.1} parent=1 // pred_check_branch
      %24 = sbr.rel (0) target = $region13
    $region12: #{tpu_custom_call.1} parent=1 // pred_region
      _
    $region13: #{tpu_custom_call.1} parent=1 // pred_fallthru
      _
    // Predicated region
    $region14: #{tpu_custom_call.1} parent=1 // pred_check
      _
    $region15: #{tpu_custom_call.1} parent=1 // pred_check_branch
      %26 = sbr.rel (0) target = $region17
    $region16: #{tpu_custom_call.1} parent=1 // pred_region
      %27 = dma.done [#allocation3], 4096
    $region17: #{tpu_custom_call.1} parent=1 // pred_fallthru
      _
    %v28 = vld [vmem:[#allocation2] sm:$0xff]
    %v29 = vld [vmem:[#allocation2 + $0x8] sm:$0xff]
    %v30 = vld [vmem:[#allocation2 + $0x10] sm:$0xff]
    %v31 = vld [vmem:[#allocation2 + $0x18] sm:$0xff]
    %v32 = vld [vmem:[#allocation2 + $0x20] sm:$0xff]
    %v33 = vld [vmem:[#allocation2 + $0x28] sm:$0xff]
    %v34 = vld [vmem:[#allocation2 + $0x30] sm:$0xff]
    %v35 = vld [vmem:[#allocation2 + $0x38] sm:$0xff]
    %v36 = vld [vmem:[#allocation2 + $0x40] sm:$0xff]
    %v37 = vld [vmem:[#allocation2 + $0x48] sm:$0xff]
    %v38 = vld [vmem:[#allocation2 + $0x50] sm:$0xff]
    %v39 = vld [vmem:[#allocation2 + $0x58] sm:$0xff]
    %v40 = vld [vmem:[#allocation2 + $0x60] sm:$0xff]
    %v41 = vld [vmem:[#allocation2 + $0x68] sm:$0xff]
    %v42 = vld [vmem:[#allocation2 + $0x70] sm:$0xff]
    %v43 = vld [vmem:[#allocation2 + $0x78] sm:$0xff]
    %v44 = vld [vmem:[#allocation2 + $0x80] sm:$0xff]
    %v45 = vld [vmem:[#allocation2 + $0x88] sm:$0xff]
    %v46 = vld [vmem:[#allocation2 + $0x90] sm:$0xff]
    %v47 = vld [vmem:[#allocation2 + $0x98] sm:$0xff]
    %v48 = vld [vmem:[#allocation2 + $0xa0] sm:$0xff]
    %v49 = vld [vmem:[#allocation2 + $0xa8] sm:$0xff]
    %v50 = vld [vmem:[#allocation2 + $0xb0] sm:$0xff]
    %v51 = vld [vmem:[#allocation2 + $0xb8] sm:$0xff]
    %v52 = vld [vmem:[#allocation2 + $0xc0] sm:$0xff]
    %v53 = vld [vmem:[#allocation2 + $0xc8] sm:$0xff]
    %v54 = vld [vmem:[#allocation2 + $0xd0] sm:$0xff]
    %v55 = vld [vmem:[#allocation2 + $0xd8] sm:$0xff]
    %v56 = vld [vmem:[#allocation2 + $0xe0] sm:$0xff]
    %v57 = vld [vmem:[#allocation2 + $0xe8] sm:$0xff]
    %v58 = vld [vmem:[#allocation2 + $0xf0] sm:$0xff]
    %v59 = vld [vmem:[#allocation2 + $0xf8] sm:$0xff]
    %v60 = vadd.f32 %v28, %v29
    %61 = vadd.xlane.f32.xlu0 %v60
    %v62 = vpop.xlane.xlu0 %61
    %v63 = vadd.f32 %v30, %v31
    %64 = vadd.xlane.f32.xlu0 %v63
    %v65 = vpop.xlane.xlu0 %64
    %v66 = vadd.f32 %v32, %v33
    %67 = vadd.xlane.f32.xlu0 %v66
    %v68 = vpop.xlane.xlu0 %67
    %v69 = vadd.f32 %v34, %v35
    %70 = vadd.xlane.f32.xlu0 %v69
    %v71 = vpop.xlane.xlu0 %70
    %v72 = vadd.f32 %v36, %v37
    %73 = vadd.xlane.f32.xlu0 %v72
    %v74 = vpop.xlane.xlu0 %73
    %v75 = vadd.f32 %v38, %v39
    %76 = vadd.xlane.f32.xlu0 %v75
    %v77 = vpop.xlane.xlu0 %76
    %v78 = vadd.f32 %v40, %v41
    %79 = vadd.xlane.f32.xlu0 %v78
    %v80 = vpop.xlane.xlu0 %79
    %v81 = vadd.f32 %v42, %v43
    %82 = vadd.xlane.f32.xlu0 %v81
    %v83 = vpop.xlane.xlu0 %82
    %v84 = vadd.f32 %v44, %v45
    %85 = vadd.xlane.f32.xlu0 %v84
    %v86 = vpop.xlane.xlu0 %85
    %v87 = vadd.f32 %v46, %v47
    %88 = vadd.xlane.f32.xlu0 %v87
    %v89 = vpop.xlane.xlu0 %88
    %v90 = vadd.f32 %v48, %v49
    %91 = vadd.xlane.f32.xlu0 %v90
    %v92 = vpop.xlane.xlu0 %91
    %v93 = vadd.f32 %v50, %v51
    %94 = vadd.xlane.f32.xlu0 %v93
    %v95 = vpop.xlane.xlu0 %94
    %v96 = vadd.f32 %v52, %v53
    %97 = vadd.xlane.f32.xlu0 %v96
    %v98 = vpop.xlane.xlu0 %97
    %v99 = vadd.f32 %v54, %v55
    %100 = vadd.xlane.f32.xlu0 %v99
    %v101 = vpop.xlane.xlu0 %100
    %v102 = vadd.f32 %v56, %v57
    %103 = vadd.xlane.f32.xlu0 %v102
    %v104 = vpop.xlane.xlu0 %103
    %v105 = vadd.f32 %v58, %v59
    %106 = vadd.xlane.f32.xlu0 %v105
    %v107 = vpop.xlane.xlu0 %106
    %v108 = vmax.f32 %v28, %v29
    %109 = vmax.xlane.f32.xlu0 %v108
    %v110 = vpop.xlane.xlu0 %109
    %v111 = vmax.f32 %v30, %v31
    %112 = vmax.xlane.f32.xlu0 %v111
    %v113 = vpop.xlane.xlu0 %112
    %v114 = vmax.f32 %v32, %v33
    %115 = vmax.xlane.f32.xlu0 %v114
    %v116 = vpop.xlane.xlu0 %115
    %v117 = vmax.f32 %v34, %v35
    %118 = vmax.xlane.f32.xlu0 %v117
    %v119 = vpop.xlane.xlu0 %118
    %v120 = vmax.f32 %v36, %v37
    %121 = vmax.xlane.f32.xlu0 %v120
    %v122 = vpop.xlane.xlu0 %121
    %v123 = vmax.f32 %v38, %v39
    %124 = vmax.xlane.f32.xlu0 %v123
    %v125 = vpop.xlane.xlu0 %124
    %v126 = vmax.f32 %v40, %v41
    %127 = vmax.xlane.f32.xlu0 %v126
    %v128 = vpop.xlane.xlu0 %127
    %v129 = vmax.f32 %v42, %v43
    %130 = vmax.xlane.f32.xlu0 %v129
    %v131 = vpop.xlane.xlu0 %130
    %v132 = vmax.f32 %v44, %v45
    %133 = vmax.xlane.f32.xlu0 %v132
    %v134 = vpop.xlane.xlu0 %133
    %v135 = vmax.f32 %v46, %v47
    %136 = vmax.xlane.f32.xlu0 %v135
    %v137 = vpop.xlane.xlu0 %136
    %v138 = vmax.f32 %v48, %v49
    %139 = vmax.xlane.f32.xlu0 %v138
    %v140 = vpop.xlane.xlu0 %139
    %v141 = vmax.f32 %v50, %v51
    %142 = vmax.xlane.f32.xlu0 %v141
    %v143 = vpop.xlane.xlu0 %142
    %v144 = vmax.f32 %v52, %v53
    %145 = vmax.xlane.f32.xlu0 %v144
    %v146 = vpop.xlane.xlu0 %145
    %v147 = vmax.f32 %v54, %v55
    %148 = vmax.xlane.f32.xlu0 %v147
    %v149 = vpop.xlane.xlu0 %148
    %v150 = vmax.f32 %v56, %v57
    %151 = vmax.xlane.f32.xlu0 %v150
    %v152 = vpop.xlane.xlu0 %151
    %v153 = vmax.f32 %v58, %v59
    %154 = vmax.xlane.f32.xlu0 %v153
    %v155 = vpop.xlane.xlu0 %154
    %v156 = vmul.f32 %v62, 0.00390625
    %v157 = vmul.f32 %v65, 0.00390625
    %v158 = vmul.f32 %v68, 0.00390625
    %v159 = vmul.f32 %v71, 0.00390625
    %v160 = vmul.f32 %v74, 0.00390625
    %v161 = vmul.f32 %v77, 0.00390625
    %v162 = vmul.f32 %v80, 0.00390625
    %v163 = vmul.f32 %v83, 0.00390625
    %v164 = vmul.f32 %v86, 0.00390625
    %v165 = vmul.f32 %v89, 0.00390625
    %v166 = vmul.f32 %v92, 0.00390625
    %v167 = vmul.f32 %v95, 0.00390625
    %v168 = vmul.f32 %v98, 0.00390625
    %v169 = vmul.f32 %v101, 0.00390625
    %v170 = vmul.f32 %v104, 0.00390625
    %v171 = vmul.f32 %v107, 0.00390625
    %v188 = vlaneseq
    %v189 = vand.u32 %v188, 127
    %v190 = vlaneseq
    %v191 = vshrl.u32 %v190, 7
    %v192 = vsub.s32 %v189, %v191
    %v193 = vrot.slane %v156, %v192
    %v194 = vadd.s32 %v189, 4294967288
    %v195 = vlaneseq
    %v196 = vshrl.u32 %v195, 7
    %v197 = vsub.s32 %v194, %v196
    %v198 = vrot.slane %v157, %v197
    %vm199 = vcmask 130112
    %v200 = vsel %vm199, %v198, %v193
    %v201 = vadd.s32 %v189, 4294967280
    %v202 = vlaneseq
    %v203 = vshrl.u32 %v202, 7
    %v204 = vsub.s32 %v201, %v203
    %v205 = vrot.slane %v158, %v204
    %vm206 = vcmask 195712
    %v207 = vsel %vm206, %v205, %v200
    %v208 = vadd.s32 %v189, 4294967272
    %v209 = vlaneseq
    %v210 = vshrl.u32 %v209, 7
    %v211 = vsub.s32 %v208, %v210
    %v212 = vrot.slane %v159, %v211
    %vm213 = vcmask 261312
    %v214 = vsel %vm213, %v212, %v207
    %v215 = vadd.s32 %v189, 4294967264
    %v216 = vlaneseq
    %v217 = vshrl.u32 %v216, 7
    %v218 = vsub.s32 %v215, %v217
    %v219 = vrot.slane %v160, %v218
    %vm220 = vcmask 326912
    %v221 = vsel %vm220, %v219, %v214
    %v222 = vadd.s32 %v189, 4294967256
    %v223 = vlaneseq
    %v224 = vshrl.u32 %v223, 7
    %v225 = vsub.s32 %v222, %v224
    %v226 = vrot.slane %v161, %v225
    %vm227 = vcmask 392512
    %v228 = vsel %vm227, %v226, %v221
    %v229 = vadd.s32 %v189, 4294967248
    %v230 = vlaneseq
    %v231 = vshrl.u32 %v230, 7
    %v232 = vsub.s32 %v229, %v231
    %v233 = vrot.slane %v162, %v232
    %vm234 = vcmask 458112
    %v235 = vsel %vm234, %v233, %v228
    %v236 = vadd.s32 %v189, 4294967240
    %v237 = vlaneseq
    %v238 = vshrl.u32 %v237, 7
    %v239 = vsub.s32 %v236, %v238
    %v240 = vrot.slane %v163, %v239
    %vm241 = vcmask 523712
    %v242 = vsel %vm241, %v240, %v235
    %v243 = vlaneseq
    %v244 = vshrl.u32 %v243, 7
    %v245 = vsub.s32 %v189, %v244
    %v246 = vrot.slane %v164, %v245
    %v247 = vlaneseq
    %v248 = vshrl.u32 %v247, 7
    %v249 = vsub.s32 %v194, %v248
    %v250 = vrot.slane %v165, %v249
    %v251 = vsel %vm199, %v250, %v246
    %v252 = vlaneseq
    %v253 = vshrl.u32 %v252, 7
    %v254 = vsub.s32 %v201, %v253
    %v255 = vrot.slane %v166, %v254
    %v256 = vsel %vm206, %v255, %v251
    %v257 = vlaneseq
    %v258 = vshrl.u32 %v257, 7
    %v259 = vsub.s32 %v208, %v258
    %v260 = vrot.slane %v167, %v259
    %v261 = vsel %vm213, %v260, %v256
    %v262 = vlaneseq
    %v263 = vshrl.u32 %v262, 7
    %v264 = vsub.s32 %v215, %v263
    %v265 = vrot.slane %v168, %v264
    %v266 = vsel %vm220, %v265, %v261
    %v267 = vlaneseq
    %v268 = vshrl.u32 %v267, 7
    %v269 = vsub.s32 %v222, %v268
    %v270 = vrot.slane %v169, %v269
    %v271 = vsel %vm227, %v270, %v266
    %v272 = vlaneseq
    %v273 = vshrl.u32 %v272, 7
    %v274 = vsub.s32 %v229, %v273
    %v275 = vrot.slane %v170, %v274
    %v276 = vsel %vm234, %v275, %v271
    %v277 = vlaneseq
    %v278 = vshrl.u32 %v277, 7
    %v279 = vsub.s32 %v236, %v278
    %v280 = vrot.slane %v171, %v279
    %v281 = vsel %vm241, %v280, %v276
    %vm282 = vcmask 1041409
    %v283 = vsel %vm282, %v281, %v242
    %v301 = vlaneseq
    %v302 = vshrl.u32 %v301, 7
    %v303 = vsub.s32 %v189, %v302
    %v304 = vrot.slane %v110, %v303
    %v305 = vlaneseq
    %v306 = vshrl.u32 %v305, 7
    %v307 = vsub.s32 %v194, %v306
    %v308 = vrot.slane %v113, %v307
    %v309 = vsel %vm199, %v308, %v304
    %v310 = vlaneseq
    %v311 = vshrl.u32 %v310, 7
    %v312 = vsub.s32 %v201, %v311
    %v313 = vrot.slane %v116, %v312
    %v314 = vsel %vm206, %v313, %v309
    %v315 = vlaneseq
    %v316 = vshrl.u32 %v315, 7
    %v317 = vsub.s32 %v208, %v316
    %v318 = vrot.slane %v119, %v317
    %v319 = vsel %vm213, %v318, %v314
    %v320 = vlaneseq
    %v321 = vshrl.u32 %v320, 7
    %v322 = vsub.s32 %v215, %v321
    %v323 = vrot.slane %v122, %v322
    %v324 = vsel %vm220, %v323, %v319
    %v325 = vlaneseq
    %v326 = vshrl.u32 %v325, 7
    %v327 = vsub.s32 %v222, %v326
    %v328 = vrot.slane %v125, %v327
    %v329 = vsel %vm227, %v328, %v324
    %v330 = vlaneseq
    %v331 = vshrl.u32 %v330, 7
    %v332 = vsub.s32 %v229, %v331
    %v333 = vrot.slane %v128, %v332
    %v334 = vsel %vm234, %v333, %v329
    %v335 = vlaneseq
    %v336 = vshrl.u32 %v335, 7
    %v337 = vsub.s32 %v236, %v336
    %v338 = vrot.slane %v131, %v337
    %v339 = vsel %vm241, %v338, %v334
    %v340 = vlaneseq
    %v341 = vshrl.u32 %v340, 7
    %v342 = vsub.s32 %v189, %v341
    %v343 = vrot.slane %v134, %v342
    %v344 = vlaneseq
    %v345 = vshrl.u32 %v344, 7
    %v346 = vsub.s32 %v194, %v345
    %v347 = vrot.slane %v137, %v346
    %v348 = vsel %vm199, %v347, %v343
    %v349 = vlaneseq
    %v350 = vshrl.u32 %v349, 7
    %v351 = vsub.s32 %v201, %v350
    %v352 = vrot.slane %v140, %v351
    %v353 = vsel %vm206, %v352, %v348
    %v354 = vlaneseq
    %v355 = vshrl.u32 %v354, 7
    %v356 = vsub.s32 %v208, %v355
    %v357 = vrot.slane %v143, %v356
    %v358 = vsel %vm213, %v357, %v353
    %v359 = vlaneseq
    %v360 = vshrl.u32 %v359, 7
    %v361 = vsub.s32 %v215, %v360
    %v362 = vrot.slane %v146, %v361
    %v363 = vsel %vm220, %v362, %v358
    %v364 = vlaneseq
    %v365 = vshrl.u32 %v364, 7
    %v366 = vsub.s32 %v222, %v365
    %v367 = vrot.slane %v149, %v366
    %v368 = vsel %vm227, %v367, %v363
    %v369 = vlaneseq
    %v370 = vshrl.u32 %v369, 7
    %v371 = vsub.s32 %v229, %v370
    %v372 = vrot.slane %v152, %v371
    %v373 = vsel %vm234, %v372, %v368
    %v374 = vlaneseq
    %v375 = vshrl.u32 %v374, 7
    %v376 = vsub.s32 %v236, %v375
    %v377 = vrot.slane %v155, %v376
    %v378 = vsel %vm241, %v377, %v373
    %vm379 = vcmask 1043459
    %v380 = vsel %vm379, %v378, %v339
    %vm382 = vcmask 1041408
    %v383 = vsel %vm382, %v283, %v380
    %v384 = vld [vmem:[%s1] sm:$0xf]
    %v385 = vld [vmem:[%s2] sm:$0xff]
    %v386 = vld [vmem:[%s2 + $0x8] sm:$0xff]
    %v387 = vld [vmem:[%s2 + $0x10] sm:$0xff]
    %v388 = vld [vmem:[%s2 + $0x18] sm:$0xff]
    %v389 = vld [vmem:[%s2 + $0x20] sm:$0xff]
    %v390 = vld [vmem:[%s2 + $0x28] sm:$0xff]
    %v391 = vld [vmem:[%s2 + $0x30] sm:$0xff]
    %v392 = vld [vmem:[%s2 + $0x38] sm:$0xff]
    %vm393 = vcmask 523264
    %v395 = vsel %vm393, %v383, 0
    %v398 = vsel %vm393, %v384, 0
    %400 = vmatprep.subr.mxu0 0.0
    %401 = vmatpush1.xpose.msra.mxu0 %v398
    %402 = vmatprep.subr.mxu0 0.0
    %403 = vmatpush1.xpose.msra.mxu0 0.0
    %404 = vmatprep.subr.mxu0 0.0
    %405 = vmatpush1.xpose.msra.mxu0 0.0
    %406 = vmatprep.subr.mxu0 0.0
    %407 = vmatpush1.xpose.msra.mxu0 0.0
    %408 = vmatprep.subr.mxu0 0.0
    %409 = vmatpush1.xpose.msra.mxu0 0.0
    %410 = vmatprep.subr.mxu0 0.0
    %411 = vmatpush1.xpose.msra.mxu0 0.0
    %412 = vmatprep.subr.mxu0 0.0
    %413 = vmatpush1.xpose.msra.mxu0 0.0
    %414 = vmatprep.subr.mxu0 0.0
    %415 = vmatpush1.xpose.msra.mxu0 0.0
    %416 = vmatprep.subr.mxu0 0.0
    %417 = vmatpush1.xpose.msra.mxu0 0.0
    %418 = vmatprep.subr.mxu0 0.0
    %419 = vmatpush1.xpose.msra.mxu0 0.0
    %420 = vmatprep.subr.mxu0 0.0
    %421 = vmatpush1.xpose.msra.mxu0 0.0
    %422 = vmatprep.subr.mxu0 0.0
    %423 = vmatpush1.xpose.msra.mxu0 0.0
    %424 = vmatprep.subr.mxu0 0.0
    %425 = vmatpush1.xpose.msra.mxu0 0.0
    %426 = vmatprep.subr.mxu0 0.0
    %427 = vmatpush1.xpose.msra.mxu0 0.0
    %428 = vmatprep.subr.mxu0 0.0
    %429 = vmatpush1.xpose.msra.mxu0 0.0
    %430 = vmatprep.subr.mxu0 0.0
    %431 = vmatpush1.xpose.msra.mxu0 0.0
    %432 = vmatprep.subr.mxu0 0.0
    %433 = vmatpush1.xpose.msra.mxu0 0.0
    %434 = vmatprep.subr.mxu0 0.0
    %435 = vmatpush1.xpose.msra.mxu0 0.0
    %436 = vmatprep.subr.mxu0 0.0
    %437 = vmatpush1.xpose.msra.mxu0 0.0
    %438 = vmatprep.subr.mxu0 0.0
    %439 = vmatpush1.xpose.msra.mxu0 0.0
    %440 = vmatprep.subr.mxu0 0.0
    %441 = vmatpush1.xpose.msra.mxu0 0.0
    %442 = vmatprep.subr.mxu0 0.0
    %443 = vmatpush1.xpose.msra.mxu0 0.0
    %444 = vmatprep.subr.mxu0 0.0
    %445 = vmatpush1.xpose.msra.mxu0 0.0
    %446 = vmatprep.subr.mxu0 0.0
    %447 = vmatpush1.xpose.msra.mxu0 0.0
    %448 = vmatprep.subr.mxu0 0.0
    %449 = vmatpush1.xpose.msra.mxu0 0.0
    %450 = vmatprep.subr.mxu0 0.0
    %451 = vmatpush1.xpose.msra.mxu0 0.0
    %452 = vmatprep.subr.mxu0 0.0
    %453 = vmatpush1.xpose.msra.mxu0 0.0
    %454 = vmatprep.subr.mxu0 0.0
    %455 = vmatpush1.xpose.msra.mxu0 0.0
    %456 = vmatprep.subr.mxu0 0.0
    %457 = vmatpush1.xpose.msra.mxu0 0.0
    %458 = vmatprep.subr.mxu0 0.0
    %459 = vmatpush1.xpose.msra.mxu0 0.0
    %460 = vmatprep.subr.mxu0 0.0
    %461 = vmatpush1.xpose.msra.mxu0 0.0
    %462 = vmatprep.subr.mxu0 0.0
    %463 = vmatpush1.xpose.msra.mxu0 0.0
    %464 = vmatprep.mubr.f32.mxu0 0.0
    %465 = vmatmul.mubr.f32.gmra.mrb[0].mxu0 %v395
    %v466 = vpop.f32.mrb[0].mxu0
    %v467 = vadd.f32 0.0, %v466
    %v468 = vpop.f32.mrb[0].mxu0
    %469 = vdwg.mxu0
    %v470 = vmax.f32 %v467, 0.0
    %vm471 = vcmask 31744
    %v473 = vsel %vm471, %v470, 0
    %v476 = vsel %vm471, %v385, 0
    %v479 = vsel %vm471, %v386, 0
    %v482 = vsel %vm471, %v387, 0
    %v485 = vsel %vm471, %v388, 0
    %v488 = vsel %vm471, %v389, 0
    %v491 = vsel %vm471, %v390, 0
    %v494 = vsel %vm471, %v391, 0
    %v497 = vsel %vm471, %v392, 0
    %499 = vmatprep.subr.mxu0 0.0
    %500 = vmatpush1.xpose.msra.mxu0 %v476
    %501 = vmatprep.subr.mxu0 0.0
    %502 = vmatpush1.xpose.msra.mxu0 %v479
    %503 = vmatprep.subr.mxu0 0.0
    %504 = vmatpush1.xpose.msra.mxu0 %v482
    %505 = vmatprep.subr.mxu0 0.0
    %506 = vmatpush1.xpose.msra.mxu0 %v485
    %507 = vmatprep.subr.mxu0 0.0
    %508 = vmatpush1.xpose.msra.mxu0 %v488
    %509 = vmatprep.subr.mxu0 0.0
    %510 = vmatpush1.xpose.msra.mxu0 %v491
    %511 = vmatprep.subr.mxu0 0.0
    %512 = vmatpush1.xpose.msra.mxu0 %v494
    %513 = vmatprep.subr.mxu0 0.0
    %514 = vmatpush1.xpose.msra.mxu0 %v497
    %515 = vmatprep.subr.mxu0 0.0
    %516 = vmatpush1.xpose.msra.mxu0 0.0
    %517 = vmatprep.subr.mxu0 0.0
    %518 = vmatpush1.xpose.msra.mxu0 0.0
    %519 = vmatprep.subr.mxu0 0.0
    %520 = vmatpush1.xpose.msra.mxu0 0.0
    %521 = vmatprep.subr.mxu0 0.0
    %522 = vmatpush1.xpose.msra.mxu0 0.0
    %523 = vmatprep.subr.mxu0 0.0
    %524 = vmatpush1.xpose.msra.mxu0 0.0
    %525 = vmatprep.subr.mxu0 0.0
    %526 = vmatpush1.xpose.msra.mxu0 0.0
    %527 = vmatprep.subr.mxu0 0.0
    %528 = vmatpush1.xpose.msra.mxu0 0.0
    %529 = vmatprep.subr.mxu0 0.0
    %530 = vmatpush1.xpose.msra.mxu0 0.0
    %531 = vmatprep.subr.mxu0 0.0
    %532 = vmatpush1.xpose.msra.mxu0 0.0
    %533 = vmatprep.subr.mxu0 0.0
    %534 = vmatpush1.xpose.msra.mxu0 0.0
    %535 = vmatprep.subr.mxu0 0.0
    %536 = vmatpush1.xpose.msra.mxu0 0.0
    %537 = vmatprep.subr.mxu0 0.0
    %538 = vmatpush1.xpose.msra.mxu0 0.0
    %539 = vmatprep.subr.mxu0 0.0
    %540 = vmatpush1.xpose.msra.mxu0 0.0
    %541 = vmatprep.subr.mxu0 0.0
    %542 = vmatpush1.xpose.msra.mxu0 0.0
    %543 = vmatprep.subr.mxu0 0.0
    %544 = vmatpush1.xpose.msra.mxu0 0.0
    %545 = vmatprep.subr.mxu0 0.0
    %546 = vmatpush1.xpose.msra.mxu0 0.0
    %547 = vmatprep.subr.mxu0 0.0
    %548 = vmatpush1.xpose.msra.mxu0 0.0
    %549 = vmatprep.subr.mxu0 0.0
    %550 = vmatpush1.xpose.msra.mxu0 0.0
    %551 = vmatprep.subr.mxu0 0.0
    %552 = vmatpush1.xpose.msra.mxu0 0.0
    %553 = vmatprep.subr.mxu0 0.0
    %554 = vmatpush1.xpose.msra.mxu0 0.0
    %555 = vmatprep.subr.mxu0 0.0
    %556 = vmatpush1.xpose.msra.mxu0 0.0
    %557 = vmatprep.subr.mxu0 0.0
    %558 = vmatpush1.xpose.msra.mxu0 0.0
    %559 = vmatprep.subr.mxu0 0.0
    %560 = vmatpush1.xpose.msra.mxu0 0.0
    %561 = vmatprep.subr.mxu0 0.0
    %562 = vmatpush1.xpose.msra.mxu0 0.0
    %563 = vmatprep.mubr.f32.mxu0 0.0
    %564 = vmatmul.mubr.f32.gmra.mrb[0].mxu0 %v473
    %v565 = vpop.f32.mrb[0].mxu0
    %v566 = vadd.f32 0.0, %v565
    %v567 = vpop.f32.mrb[0].mxu0
    %568 = vdwg.mxu0
    %v570 = vrot.slane %v566, 2
    %v572 = vadd.f32 %v566, %v570
    %v573 = vxor.u32 %v572, 2147483648
    %v574 = vmul.f32 %v573, 1.442695
    %v575 = vpow.pop %v574
    %v576 = vadd.f32 %v575, 1.0
    %v577 = vrcp.pop %v576
    %v578 = vmul.f32 1.0, %v577
    %v579 = vlaneseq
    %v580 = vshrl.u32 %v579, 7
    %v581 = vsub.s32 0, %v580
    %v582 = vrot.slane %v578, %v581
    %584 = vbcast.lane.b32.xlu0 %v582, 256
    %v585 = vpop.permute.xlu0 %584
    %s587 = sor.u32 256, 8
    %588 = vbcast.lane.b32.xlu0 %v582, %s587
    %v589 = vpop.permute.xlu0 %588
    %s591 = sor.u32 256, 16
    %592 = vbcast.lane.b32.xlu0 %v582, %s591
    %v593 = vpop.permute.xlu0 %592
    %s595 = sor.u32 256, 24
    %596 = vbcast.lane.b32.xlu0 %v582, %s595
    %v597 = vpop.permute.xlu0 %596
    %s599 = sor.u32 256, 32
    %600 = vbcast.lane.b32.xlu0 %v582, %s599
    %v601 = vpop.permute.xlu0 %600
    %s603 = sor.u32 256, 40
    %604 = vbcast.lane.b32.xlu0 %v582, %s603
    %v605 = vpop.permute.xlu0 %604
    %s607 = sor.u32 256, 48
    %608 = vbcast.lane.b32.xlu0 %v582, %s607
    %v609 = vpop.permute.xlu0 %608
    %s611 = sor.u32 256, 56
    %612 = vbcast.lane.b32.xlu0 %v582, %s611
    %v613 = vpop.permute.xlu0 %612
    %v614 = vlaneseq
    %v615 = vshrl.u32 %v614, 7
    %v616 = vsub.s32 1, %v615
    %v617 = vrot.slane %v578, %v616
    %619 = vbcast.lane.b32.xlu0 %v617, 256
    %v620 = vpop.permute.xlu0 %619
    %s622 = sor.u32 256, 8
    %623 = vbcast.lane.b32.xlu0 %v617, %s622
    %v624 = vpop.permute.xlu0 %623
    %s626 = sor.u32 256, 16
    %627 = vbcast.lane.b32.xlu0 %v617, %s626
    %v628 = vpop.permute.xlu0 %627
    %s630 = sor.u32 256, 24
    %631 = vbcast.lane.b32.xlu0 %v617, %s630
    %v632 = vpop.permute.xlu0 %631
    %s634 = sor.u32 256, 32
    %635 = vbcast.lane.b32.xlu0 %v617, %s634
    %v636 = vpop.permute.xlu0 %635
    %s638 = sor.u32 256, 40
    %639 = vbcast.lane.b32.xlu0 %v617, %s638
    %v640 = vpop.permute.xlu0 %639
    %s642 = sor.u32 256, 48
    %643 = vbcast.lane.b32.xlu0 %v617, %s642
    %v644 = vpop.permute.xlu0 %643
    %s646 = sor.u32 256, 56
    %647 = vbcast.lane.b32.xlu0 %v617, %s646
    %v648 = vpop.permute.xlu0 %647
    %vm649 = vcmask 7168
    %650 = vst.msk [vmem:[%s3] sm:$0xff] %vm649, %v585
    %651 = vst.msk [vmem:[%s3 + $0x8] sm:$0xff] %vm649, %v589
    %652 = vst.msk [vmem:[%s3 + $0x10] sm:$0xff] %vm649, %v593
    %653 = vst.msk [vmem:[%s3 + $0x18] sm:$0xff] %vm649, %v597
    %654 = vst.msk [vmem:[%s3 + $0x20] sm:$0xff] %vm649, %v601
    %655 = vst.msk [vmem:[%s3 + $0x28] sm:$0xff] %vm649, %v605
    %656 = vst.msk [vmem:[%s3 + $0x30] sm:$0xff] %vm649, %v609
    %657 = vst.msk [vmem:[%s3 + $0x38] sm:$0xff] %vm649, %v613
    %658 = vst.msk [vmem:[%s3 + $0x40] sm:$0xff] %vm649, %v620
    %659 = vst.msk [vmem:[%s3 + $0x48] sm:$0xff] %vm649, %v624
    %660 = vst.msk [vmem:[%s3 + $0x50] sm:$0xff] %vm649, %v628
    %661 = vst.msk [vmem:[%s3 + $0x58] sm:$0xff] %vm649, %v632
    %662 = vst.msk [vmem:[%s3 + $0x60] sm:$0xff] %vm649, %v636
    %663 = vst.msk [vmem:[%s3 + $0x68] sm:$0xff] %vm649, %v640
    %664 = vst.msk [vmem:[%s3 + $0x70] sm:$0xff] %vm649, %v644
    %665 = vst.msk [vmem:[%s3 + $0x78] sm:$0xff] %vm649, %v648
    // Predicated region
    $region18: #{tpu_custom_call.1} parent=1 // pred_check
      _
    $region19: #{tpu_custom_call.1} parent=1 // pred_check_branch
      %667 = sbr.rel (0) target = $region21
    $region20: #{tpu_custom_call.1} parent=1 // pred_region
      _
    $region21: #{tpu_custom_call.1} parent=1 // pred_fallthru
      _
    // Predicated region
    $region22: #{tpu_custom_call.1} parent=1 // pred_check
      _
    $region23: #{tpu_custom_call.1} parent=1 // pred_check_branch
      %669 = sbr.rel (0) target = $region25
    $region24: #{tpu_custom_call.1} parent=1 // pred_region
      _
    $region25: #{tpu_custom_call.1} parent=1 // pred_fallthru
      _
    %670 = vsyncpa [#allocation3], 1

</llo_original>
